<compile_context>
chip_gen: v6e
topology: v6e:2x2x1
jax: 0.10.0
libtpu: 0.0.40
codegen_flags: <defaults>
</compile_context>

<pallas_src>
import functools

import jax
import jax.numpy as jnp
from jax.experimental import pallas as pl
from jax.experimental.pallas import tpu as pltpu


def saxspy_kernel(xpf_ref, wc_ref, wlbig_ref, bias2_ref, out_ref, cols_ref,
                  *, N, Cpad, H, W):
    """Fused Conv2d(3x3, pad=1) + width-Linear for ALL batch elements.

    xpf_ref:   (N, Cpad, (H+3)*(W+2))  zero-padded input, rows flattened, channels padded to Cpad
    wc_ref:    (Cout, 9*Cpad)          conv weight, columns ordered (dy, dx, channel), pad chans = 0
    wlbig_ref: (H*(W+2), H*Kpad)       block-diagonal Linear weight (pad rows / pad out-feats = 0)
    bias2_ref: (Cout, H*Kpad)          fused conv+linear bias (pad out-feats = 0)
    out_ref:   (N, Cout, H*Kpad)       lane-dense (H*Kpad = multiple of 128) output
    cols_ref:  (9*Cpad, H*(W+2))       VMEM scratch for the in-kernel im2col
    """
    S = W + 2            # row stride of the padded input
    L = H * S            # conv-matmul column count (W valid + 2 junk cols per row)

    # Hoist the (grid-invariant) weight loads out of the batch loop.
    wc = wc_ref[...]          # (Cout, 9*Cpad)
    wlbig = wlbig_ref[...]    # (L, H*Kpad)
    bias2 = bias2_ref[...]    # (Cout, H*Kpad)

    # Static unroll over the (small) batch: one grid step -> no per-step
    # pipeline overhead on single-TC chips.
    for n in range(N):
        # In-kernel im2col: tap (dy, dx) of the 3x3 window is a static contiguous
        # lane slice of the flattened padded input at offset dy*S + dx.  Each tap
        # occupies a full 8-sublane block (Cpad=8) so the scratch writes are
        # unmasked full-tile stores.
        for dy in range(3):
            for dx in range(3):
                j = dy * 3 + dx
                off = dy * S + dx
                cols_ref[j * Cpad:(j + 1) * Cpad, :] = xpf_ref[n, :, off:off + L]

        # Conv2d(kernel=3, padding=1) as ONE MXU matmul over all spatial positions.
        # NOTE(scale): on v6e/v7x cast both operands to bf16 here (keep
        # preferred_element_type=f32) to hit the bf16 MXU rate; at toy shapes the
        # kernel is overhead-bound so f32 is kept for exactness.
        acc = jnp.dot(wc, cols_ref[...],
                      preferred_element_type=jnp.float32)          # (Cout, L)

        # nn.Linear over the width axis as ONE MXU matmul: the block-diagonal
        # weight selects valid w < W columns per output row h; junk columns
        # (w' >= W) hit zero rows.  N dim = H*Kpad = 128 -> one full MXU lane tile.
        y = jnp.dot(acc, wlbig,
                    preferred_element_type=jnp.float32)            # (Cout, H*Kpad)
        y = y + bias2                                              # fused conv+linear bias

        out_ref[n] = y.astype(out_ref.dtype)                       # one unmasked 128-lane store


def saxspy_pack_params(conv_w, conv_b, lin_w, lin_b, H, W):
    """One-time weight repack (hoisted out of the per-call forward).

    conv_w: (Cout, Cin, 3, 3); conv_b: (Cout,); lin_w: (K, W); lin_b: (K,).
    Returns (wc, wlbig, bias2) packed for the kernel.
    """
    Cout, Cin, kh, kw = conv_w.shape
    assert (kh, kw) == (3, 3)
    K = lin_w.shape[0]
    assert lin_w.shape[1] == W, "nn.Linear acts on the width axis -> in_features must equal W"

    S = W + 2
    Cpad = ((Cin + 7) // 8) * 8     # sublane-aligned im2col tap blocks
    Kpad = ((K + 7) // 8) * 8       # lane-dense output: H*Kpad is a multiple of 128 for H % 16 == 0

    # Conv weight -> (Cout, 9*Cpad), columns ordered (dy, dx, channel); pad channels zeroed.
    w = jnp.transpose(conv_w, (0, 2, 3, 1)).astype(jnp.float32)         # (Cout, 3, 3, Cin)
    w = jnp.pad(w, ((0, 0), (0, 0), (0, 0), (0, Cpad - Cin)))
    wc = w.reshape(Cout, 9 * Cpad)

    # Block-diagonal Linear weight: out[c, h*Kpad+k] = sum_{w<W} acc[c, h*S+w] * lin_w[k, w].
    # Rows W..S-1 (junk padded-row columns) and columns K..Kpad-1 (output padding) stay zero.
    wl_pad = jnp.zeros((S, Kpad), jnp.float32).at[:W, :K].set(lin_w.T.astype(jnp.float32))
    wlbig = jnp.kron(jnp.eye(H, dtype=jnp.float32), wl_pad)             # (H*S, H*Kpad)
    # NOTE(scale): wlbig grows as H^2*S*Kpad; for large H drop the kron and add a grid
    # axis over H-tiles reusing the small (S, Kpad) wl_pad (keeps v7x's 64 MiB VMEM happy),
    # and mark constant-index weight specs with pipeline_mode=pl.Buffered(1).

    # Fold conv bias through the Linear: conv_b[c] * sum_w lin_w[k, w] + lin_b[k].
    b = conv_b[:, None].astype(jnp.float32) * jnp.sum(lin_w, axis=1)[None, :] + lin_b[None, :]
    b = jnp.pad(b.astype(jnp.float32), ((0, 0), (0, Kpad - K)))         # (Cout, Kpad)
    bias2 = jnp.tile(b, (1, H))                                         # (Cout, H*Kpad)

    return wc, wlbig, bias2


@functools.partial(jax.jit, static_argnames=("out_features",))
def saxspy_forward(x, wc, wlbig, bias2, *, out_features):
    """x: (N, Cin, H, W) NCHW. Returns (N, Cout, H, out_features) float32."""
    N, Cin, H, W = x.shape
    Cout = wc.shape[0]
    Cpad = wc.shape[1] // 9
    S = W + 2
    P = (H + 3) * S
    L = H * S
    HKpad = wlbig.shape[1]
    Kpad = HKpad // H

    # Pad 1 top / 2 bottom / 1 left / 1 right (extra all-zero bottom row keeps every
    # shifted in-kernel tap slice in bounds; valid outputs never read it), pad channels
    # to Cpad, and flatten the rows (free reshape).
    xp = jnp.pad(x.astype(jnp.float32), ((0, 0), (0, Cpad - Cin), (1, 2), (1, 1)))
    xpf = xp.reshape(N, Cpad, P)

    kernel = functools.partial(saxspy_kernel, N=N, Cpad=Cpad, H=H, W=W)

    out_flat = pl.pallas_call(
        kernel,
        out_shape=jax.ShapeDtypeStruct((N, Cout, HKpad), jnp.float32),
        grid_spec=pltpu.PrefetchScalarGridSpec(
            num_scalar_prefetch=0,
            # Single grid step: whole working set (<1 MiB) is VMEM-resident and the
            # batch is unrolled in-kernel.  On a 2-TC chip (v7x) one could instead use
            # grid=(N,) with dimension_semantics=("parallel",) to split the batch.
            grid=(1,),
            in_specs=[
                pl.BlockSpec((N, Cpad, P), lambda i: (0, 0, 0)),
                pl.BlockSpec((Cout, 9 * Cpad), lambda i: (0, 0)),
                pl.BlockSpec((L, HKpad), lambda i: (0, 0)),
                pl.BlockSpec((Cout, HKpad), lambda i: (0, 0)),
            ],
            out_specs=pl.BlockSpec((N, Cout, HKpad), lambda i: (0, 0, 0)),
            scratch_shapes=[pltpu.VMEM((9 * Cpad, L), jnp.float32)],
        ),
        compiler_params=pltpu.CompilerParams(
            dimension_semantics=("arbitrary",)),
    )(xpf, wc, wlbig, bias2)

    # Free reshape to (N, Cout, H, Kpad) then drop the lane padding (Kpad -> K).
    return out_flat.reshape(N, Cout, H, Kpad)[..., :out_features]


if __name__ == "__main__":
    # Shapes consistent with the module: input_shape=4, hidden_units=16,
    # output_shape=3, spatial 16x16 (W must equal hidden_units), batch=2.
    N, Cin, H, W = 2, 4, 16, 16
    hidden, K = 16, 3

    key = jax.random.PRNGKey(0)
    k1, k2, k3, k4, k5 = jax.random.split(key, 5)
    conv_w = 0.1 * jax.random.normal(k1, (hidden, Cin, 3, 3), jnp.float32)
    conv_b = 0.1 * jax.random.normal(k2, (hidden,), jnp.float32)
    lin_w = 0.1 * jax.random.normal(k3, (K, hidden), jnp.float32)
    lin_b = 0.1 * jax.random.normal(k4, (K,), jnp.float32)
    x = jax.random.normal(k5, (N, Cin, H, W), jnp.float32)

    # Weight repack done ONCE (weights are static across forward calls).
    wc, wlbig, bias2 = saxspy_pack_params(conv_w, conv_b, lin_w, lin_b, H, W)

    out = saxspy_forward(x, wc, wlbig, bias2, out_features=K)
    out = jax.block_until_ready(out)

    # Pure-JAX reference (highest precision so the comparison isolates kernel error).
    conv_ref = jax.lax.conv_general_dilated(
        x, conv_w, window_strides=(1, 1), padding="SAME",
        dimension_numbers=("NCHW", "OIHW", "NCHW"),
        precision=jax.lax.Precision.HIGHEST) + conv_b[None, :, None, None]
    ref = jnp.einsum("nchw,kw->nchk", conv_ref, lin_w,
                     precision=jax.lax.Precision.HIGHEST) + lin_b

    assert out.shape == (N, hidden, H, K)
    # Tolerance leaves headroom for MXU pass-precision differences between the
    # Pallas dots and the XLA reference; structural bugs are orders of magnitude larger.
    assert jnp.allclose(out, ref, atol=5e-3, rtol=5e-3), "mismatch vs reference"

    print("KERNEL_OK")
</pallas_src>

<mosaic_0001>
module attributes {stable_mosaic.version = 11 : i64} {
  func.func @saxspy_kernel(%arg0: i32, %arg1: memref<2x8x342xf32, #tpu.memory_space<vmem>>, %arg2: memref<16x72xf32, #tpu.memory_space<vmem>>, %arg3: memref<288x128xf32, #tpu.memory_space<vmem>>, %arg4: memref<16x128xf32, #tpu.memory_space<vmem>>, %arg5: memref<2x16x128xf32, #tpu.memory_space<vmem>>, %arg6: memref<72x288xf32, #tpu.memory_space<vmem>>) attributes {dimension_semantics = [#tpu.dimension_semantics<arbitrary>], iteration_bounds = array<i64: 1>, scalar_prefetch = 0 : i64, scratch_operands = 1 : i64, tpu.core_type = #tpu.core_type<tc>, window_params = [{pipeline_mode = #tpu.pipeline_mode<synchronous>, transform_indices = @transform_0, window_bounds = array<i64: 2, 8, 342>}, {pipeline_mode = #tpu.pipeline_mode<synchronous>, transform_indices = @transform_1, window_bounds = array<i64: 16, 72>}, {pipeline_mode = #tpu.pipeline_mode<synchronous>, transform_indices = @transform_2, window_bounds = array<i64: 288, 128>}, {pipeline_mode = #tpu.pipeline_mode<synchronous>, transform_indices = @transform_3, window_bounds = array<i64: 16, 128>}, {pipeline_mode = #tpu.pipeline_mode<synchronous>, transform_indices = @transform_4, window_bounds = array<i64: 2, 16, 128>}]} {
    %c0 = arith.constant 0 : index
    %c0_0 = arith.constant 0 : index
    %0 = vector.load %arg2[%c0, %c0_0] : memref<16x72xf32, #tpu.memory_space<vmem>>, vector<16x72xf32>
    %c0_1 = arith.constant 0 : index
    %c0_2 = arith.constant 0 : index
    %1 = vector.load %arg3[%c0_1, %c0_2] : memref<288x128xf32, #tpu.memory_space<vmem>>, vector<288x128xf32>
    %c0_3 = arith.constant 0 : index
    %c0_4 = arith.constant 0 : index
    %2 = vector.load %arg4[%c0_3, %c0_4] : memref<16x128xf32, #tpu.memory_space<vmem>>, vector<16x128xf32>
    %c0_5 = arith.constant 0 : index
    %c0_6 = arith.constant 0 : index
    %c0_7 = arith.constant 0 : index
    %3 = vector.load %arg1[%c0_5, %c0_6, %c0_7] : memref<2x8x342xf32, #tpu.memory_space<vmem>>, vector<1x8x288xf32>
    %4 = vector.shape_cast %3 : vector<1x8x288xf32> to vector<8x288xf32>
    %c0_8 = arith.constant 0 : index
    %c0_9 = arith.constant 0 : index
    %5 = vector.load %arg6[%c0_8, %c0_9] : memref<72x288xf32, #tpu.memory_space<vmem>>, vector<8x288xf32>
    tpu.vector_store %arg6[%c0_8, %c0_9], %4 {strides = array<i32>} : memref<72x288xf32, #tpu.memory_space<vmem>>, vector<8x288xf32>,
    %c0_10 = arith.constant 0 : index
    %c0_11 = arith.constant 0 : index
    %c1 = arith.constant 1 : index
    %6 = vector.load %arg1[%c0_10, %c0_11, %c1] : memref<2x8x342xf32, #tpu.memory_space<vmem>>, vector<1x8x288xf32>
    %7 = vector.shape_cast %6 : vector<1x8x288xf32> to vector<8x288xf32>
    %c8 = arith.constant 8 : index
    %c0_12 = arith.constant 0 : index
    %8 = vector.load %arg6[%c8, %c0_12] : memref<72x288xf32, #tpu.memory_space<vmem>>, vector<8x288xf32>
    tpu.vector_store %arg6[%c8, %c0_12], %7 {strides = array<i32>} : memref<72x288xf32, #tpu.memory_space<vmem>>, vector<8x288xf32>,
    %c0_13 = arith.constant 0 : index
    %c0_14 = arith.constant 0 : index
    %c2 = arith.constant 2 : index
    %9 = vector.load %arg1[%c0_13, %c0_14, %c2] : memref<2x8x342xf32, #tpu.memory_space<vmem>>, vector<1x8x288xf32>
    %10 = vector.shape_cast %9 : vector<1x8x288xf32> to vector<8x288xf32>
    %c16 = arith.constant 16 : index
    %c0_15 = arith.constant 0 : index
    %11 = vector.load %arg6[%c16, %c0_15] : memref<72x288xf32, #tpu.memory_space<vmem>>, vector<8x288xf32>
    tpu.vector_store %arg6[%c16, %c0_15], %10 {strides = array<i32>} : memref<72x288xf32, #tpu.memory_space<vmem>>, vector<8x288xf32>,
    %c0_16 = arith.constant 0 : index
    %c0_17 = arith.constant 0 : index
    %c18 = arith.constant 18 : index
    %12 = vector.load %arg1[%c0_16, %c0_17, %c18] : memref<2x8x342xf32, #tpu.memory_space<vmem>>, vector<1x8x288xf32>
    %13 = vector.shape_cast %12 : vector<1x8x288xf32> to vector<8x288xf32>
    %c24 = arith.constant 24 : index
    %c0_18 = arith.constant 0 : index
    %14 = vector.load %arg6[%c24, %c0_18] : memref<72x288xf32, #tpu.memory_space<vmem>>, vector<8x288xf32>
    tpu.vector_store %arg6[%c24, %c0_18], %13 {strides = array<i32>} : memref<72x288xf32, #tpu.memory_space<vmem>>, vector<8x288xf32>,
    %c0_19 = arith.constant 0 : index
    %c0_20 = arith.constant 0 : index
    %c19 = arith.constant 19 : index
    %15 = vector.load %arg1[%c0_19, %c0_20, %c19] : memref<2x8x342xf32, #tpu.memory_space<vmem>>, vector<1x8x288xf32>
    %16 = vector.shape_cast %15 : vector<1x8x288xf32> to vector<8x288xf32>
    %c32 = arith.constant 32 : index
    %c0_21 = arith.constant 0 : index
    %17 = vector.load %arg6[%c32, %c0_21] : memref<72x288xf32, #tpu.memory_space<vmem>>, vector<8x288xf32>
    tpu.vector_store %arg6[%c32, %c0_21], %16 {strides = array<i32>} : memref<72x288xf32, #tpu.memory_space<vmem>>, vector<8x288xf32>,
    %c0_22 = arith.constant 0 : index
    %c0_23 = arith.constant 0 : index
    %c20 = arith.constant 20 : index
    %18 = vector.load %arg1[%c0_22, %c0_23, %c20] : memref<2x8x342xf32, #tpu.memory_space<vmem>>, vector<1x8x288xf32>
    %19 = vector.shape_cast %18 : vector<1x8x288xf32> to vector<8x288xf32>
    %c40 = arith.constant 40 : index
    %c0_24 = arith.constant 0 : index
    %20 = vector.load %arg6[%c40, %c0_24] : memref<72x288xf32, #tpu.memory_space<vmem>>, vector<8x288xf32>
    tpu.vector_store %arg6[%c40, %c0_24], %19 {strides = array<i32>} : memref<72x288xf32, #tpu.memory_space<vmem>>, vector<8x288xf32>,
    %c0_25 = arith.constant 0 : index
    %c0_26 = arith.constant 0 : index
    %c36 = arith.constant 36 : index
    %21 = vector.load %arg1[%c0_25, %c0_26, %c36] : memref<2x8x342xf32, #tpu.memory_space<vmem>>, vector<1x8x288xf32>
    %22 = vector.shape_cast %21 : vector<1x8x288xf32> to vector<8x288xf32>
    %c48 = arith.constant 48 : index
    %c0_27 = arith.constant 0 : index
    %23 = vector.load %arg6[%c48, %c0_27] : memref<72x288xf32, #tpu.memory_space<vmem>>, vector<8x288xf32>
    tpu.vector_store %arg6[%c48, %c0_27], %22 {strides = array<i32>} : memref<72x288xf32, #tpu.memory_space<vmem>>, vector<8x288xf32>,
    %c0_28 = arith.constant 0 : index
    %c0_29 = arith.constant 0 : index
    %c37 = arith.constant 37 : index
    %24 = vector.load %arg1[%c0_28, %c0_29, %c37] : memref<2x8x342xf32, #tpu.memory_space<vmem>>, vector<1x8x288xf32>
    %25 = vector.shape_cast %24 : vector<1x8x288xf32> to vector<8x288xf32>
    %c56 = arith.constant 56 : index
    %c0_30 = arith.constant 0 : index
    %26 = vector.load %arg6[%c56, %c0_30] : memref<72x288xf32, #tpu.memory_space<vmem>>, vector<8x288xf32>
    tpu.vector_store %arg6[%c56, %c0_30], %25 {strides = array<i32>} : memref<72x288xf32, #tpu.memory_space<vmem>>, vector<8x288xf32>,
    %c0_31 = arith.constant 0 : index
    %c0_32 = arith.constant 0 : index
    %c38 = arith.constant 38 : index
    %27 = vector.load %arg1[%c0_31, %c0_32, %c38] : memref<2x8x342xf32, #tpu.memory_space<vmem>>, vector<1x8x288xf32>
    %28 = vector.shape_cast %27 : vector<1x8x288xf32> to vector<8x288xf32>
    %c64 = arith.constant 64 : index
    %c0_33 = arith.constant 0 : index
    %29 = vector.load %arg6[%c64, %c0_33] : memref<72x288xf32, #tpu.memory_space<vmem>>, vector<8x288xf32>
    tpu.vector_store %arg6[%c64, %c0_33], %28 {strides = array<i32>} : memref<72x288xf32, #tpu.memory_space<vmem>>, vector<8x288xf32>,
    %c0_34 = arith.constant 0 : index
    %c0_35 = arith.constant 0 : index
    %30 = vector.load %arg6[%c0_34, %c0_35] : memref<72x288xf32, #tpu.memory_space<vmem>>, vector<72x288xf32>
    %cst = arith.constant dense<0.000000e+00> : vector<16x288xf32>
    %31 = tpu.matmul %0, %30, %cst {dimension_numbers = #tpu.dot_dimension_numbers<[1], [0], [0], [1], [0, 0, 1, 1], [], []>} : vector<16x72xf32>, vector<72x288xf32>, vector<16x288xf32> -> vector<16x288xf32>
    %cst_36 = arith.constant dense<0.000000e+00> : vector<16x128xf32>
    %32 = tpu.matmul %31, %1, %cst_36 {dimension_numbers = #tpu.dot_dimension_numbers<[1], [0], [0], [1], [0, 0, 1, 1], [], []>} : vector<16x288xf32>, vector<288x128xf32>, vector<16x128xf32> -> vector<16x128xf32>
    %33 = arith.addf %32, %2 : vector<16x128xf32>
    %c0_37 = arith.constant 0 : index
    %c0_38 = arith.constant 0 : index
    %c0_39 = arith.constant 0 : index
    %34 = vector.load %arg5[%c0_37, %c0_38, %c0_39] : memref<2x16x128xf32, #tpu.memory_space<vmem>>, vector<1x16x128xf32>
    %35 = vector.shape_cast %34 : vector<1x16x128xf32> to vector<16x128xf32>
    %36 = vector.shape_cast %33 : vector<16x128xf32> to vector<1x16x128xf32>
    tpu.vector_store %arg5[%c0_37, %c0_38, %c0_39], %36 {strides = array<i32>} : memref<2x16x128xf32, #tpu.memory_space<vmem>>, vector<1x16x128xf32>,
    %c1_40 = arith.constant 1 : index
    %c0_41 = arith.constant 0 : index
    %c0_42 = arith.constant 0 : index
    %37 = vector.load %arg1[%c1_40, %c0_41, %c0_42] : memref<2x8x342xf32, #tpu.memory_space<vmem>>, vector<1x8x288xf32>
    %38 = vector.shape_cast %37 : vector<1x8x288xf32> to vector<8x288xf32>
    %c0_43 = arith.constant 0 : index
    %c0_44 = arith.constant 0 : index
    %39 = vector.load %arg6[%c0_43, %c0_44] : memref<72x288xf32, #tpu.memory_space<vmem>>, vector<8x288xf32>
    tpu.vector_store %arg6[%c0_43, %c0_44], %38 {strides = array<i32>} : memref<72x288xf32, #tpu.memory_space<vmem>>, vector<8x288xf32>,
    %c1_45 = arith.constant 1 : index
    %c0_46 = arith.constant 0 : index
    %c1_47 = arith.constant 1 : index
    %40 = vector.load %arg1[%c1_45, %c0_46, %c1_47] : memref<2x8x342xf32, #tpu.memory_space<vmem>>, vector<1x8x288xf32>
    %41 = vector.shape_cast %40 : vector<1x8x288xf32> to vector<8x288xf32>
    %c8_48 = arith.constant 8 : index
    %c0_49 = arith.constant 0 : index
    %42 = vector.load %arg6[%c8_48, %c0_49] : memref<72x288xf32, #tpu.memory_space<vmem>>, vector<8x288xf32>
    tpu.vector_store %arg6[%c8_48, %c0_49], %41 {strides = array<i32>} : memref<72x288xf32, #tpu.memory_space<vmem>>, vector<8x288xf32>,
    %c1_50 = arith.constant 1 : index
    %c0_51 = arith.constant 0 : index
    %c2_52 = arith.constant 2 : index
    %43 = vector.load %arg1[%c1_50, %c0_51, %c2_52] : memref<2x8x342xf32, #tpu.memory_space<vmem>>, vector<1x8x288xf32>
    %44 = vector.shape_cast %43 : vector<1x8x288xf32> to vector<8x288xf32>
    %c16_53 = arith.constant 16 : index
    %c0_54 = arith.constant 0 : index
    %45 = vector.load %arg6[%c16_53, %c0_54] : memref<72x288xf32, #tpu.memory_space<vmem>>, vector<8x288xf32>
    tpu.vector_store %arg6[%c16_53, %c0_54], %44 {strides = array<i32>} : memref<72x288xf32, #tpu.memory_space<vmem>>, vector<8x288xf32>,
    %c1_55 = arith.constant 1 : index
    %c0_56 = arith.constant 0 : index
    %c18_57 = arith.constant 18 : index
    %46 = vector.load %arg1[%c1_55, %c0_56, %c18_57] : memref<2x8x342xf32, #tpu.memory_space<vmem>>, vector<1x8x288xf32>
    %47 = vector.shape_cast %46 : vector<1x8x288xf32> to vector<8x288xf32>
    %c24_58 = arith.constant 24 : index
    %c0_59 = arith.constant 0 : index
    %48 = vector.load %arg6[%c24_58, %c0_59] : memref<72x288xf32, #tpu.memory_space<vmem>>, vector<8x288xf32>
    tpu.vector_store %arg6[%c24_58, %c0_59], %47 {strides = array<i32>} : memref<72x288xf32, #tpu.memory_space<vmem>>, vector<8x288xf32>,
    %c1_60 = arith.constant 1 : index
    %c0_61 = arith.constant 0 : index
    %c19_62 = arith.constant 19 : index
    %49 = vector.load %arg1[%c1_60, %c0_61, %c19_62] : memref<2x8x342xf32, #tpu.memory_space<vmem>>, vector<1x8x288xf32>
    %50 = vector.shape_cast %49 : vector<1x8x288xf32> to vector<8x288xf32>
    %c32_63 = arith.constant 32 : index
    %c0_64 = arith.constant 0 : index
    %51 = vector.load %arg6[%c32_63, %c0_64] : memref<72x288xf32, #tpu.memory_space<vmem>>, vector<8x288xf32>
    tpu.vector_store %arg6[%c32_63, %c0_64], %50 {strides = array<i32>} : memref<72x288xf32, #tpu.memory_space<vmem>>, vector<8x288xf32>,
    %c1_65 = arith.constant 1 : index
    %c0_66 = arith.constant 0 : index
    %c20_67 = arith.constant 20 : index
    %52 = vector.load %arg1[%c1_65, %c0_66, %c20_67] : memref<2x8x342xf32, #tpu.memory_space<vmem>>, vector<1x8x288xf32>
    %53 = vector.shape_cast %52 : vector<1x8x288xf32> to vector<8x288xf32>
    %c40_68 = arith.constant 40 : index
    %c0_69 = arith.constant 0 : index
    %54 = vector.load %arg6[%c40_68, %c0_69] : memref<72x288xf32, #tpu.memory_space<vmem>>, vector<8x288xf32>
    tpu.vector_store %arg6[%c40_68, %c0_69], %53 {strides = array<i32>} : memref<72x288xf32, #tpu.memory_space<vmem>>, vector<8x288xf32>,
    %c1_70 = arith.constant 1 : index
    %c0_71 = arith.constant 0 : index
    %c36_72 = arith.constant 36 : index
    %55 = vector.load %arg1[%c1_70, %c0_71, %c36_72] : memref<2x8x342xf32, #tpu.memory_space<vmem>>, vector<1x8x288xf32>
    %56 = vector.shape_cast %55 : vector<1x8x288xf32> to vector<8x288xf32>
    %c48_73 = arith.constant 48 : index
    %c0_74 = arith.constant 0 : index
    %57 = vector.load %arg6[%c48_73, %c0_74] : memref<72x288xf32, #tpu.memory_space<vmem>>, vector<8x288xf32>
    tpu.vector_store %arg6[%c48_73, %c0_74], %56 {strides = array<i32>} : memref<72x288xf32, #tpu.memory_space<vmem>>, vector<8x288xf32>,
    %c1_75 = arith.constant 1 : index
    %c0_76 = arith.constant 0 : index
    %c37_77 = arith.constant 37 : index
    %58 = vector.load %arg1[%c1_75, %c0_76, %c37_77] : memref<2x8x342xf32, #tpu.memory_space<vmem>>, vector<1x8x288xf32>
    %59 = vector.shape_cast %58 : vector<1x8x288xf32> to vector<8x288xf32>
    %c56_78 = arith.constant 56 : index
    %c0_79 = arith.constant 0 : index
    %60 = vector.load %arg6[%c56_78, %c0_79] : memref<72x288xf32, #tpu.memory_space<vmem>>, vector<8x288xf32>
    tpu.vector_store %arg6[%c56_78, %c0_79], %59 {strides = array<i32>} : memref<72x288xf32, #tpu.memory_space<vmem>>, vector<8x288xf32>,
    %c1_80 = arith.constant 1 : index
    %c0_81 = arith.constant 0 : index
    %c38_82 = arith.constant 38 : index
    %61 = vector.load %arg1[%c1_80, %c0_81, %c38_82] : memref<2x8x342xf32, #tpu.memory_space<vmem>>, vector<1x8x288xf32>
    %62 = vector.shape_cast %61 : vector<1x8x288xf32> to vector<8x288xf32>
    %c64_83 = arith.constant 64 : index
    %c0_84 = arith.constant 0 : index
    %63 = vector.load %arg6[%c64_83, %c0_84] : memref<72x288xf32, #tpu.memory_space<vmem>>, vector<8x288xf32>
    tpu.vector_store %arg6[%c64_83, %c0_84], %62 {strides = array<i32>} : memref<72x288xf32, #tpu.memory_space<vmem>>, vector<8x288xf32>,
    %c0_85 = arith.constant 0 : index
    %c0_86 = arith.constant 0 : index
    %64 = vector.load %arg6[%c0_85, %c0_86] : memref<72x288xf32, #tpu.memory_space<vmem>>, vector<72x288xf32>
    %cst_87 = arith.constant dense<0.000000e+00> : vector<16x288xf32>
    %65 = tpu.matmul %0, %64, %cst_87 {dimension_numbers = #tpu.dot_dimension_numbers<[1], [0], [0], [1], [0, 0, 1, 1], [], []>} : vector<16x72xf32>, vector<72x288xf32>, vector<16x288xf32> -> vector<16x288xf32>
    %cst_88 = arith.constant dense<0.000000e+00> : vector<16x128xf32>
    %66 = tpu.matmul %65, %1, %cst_88 {dimension_numbers = #tpu.dot_dimension_numbers<[1], [0], [0], [1], [0, 0, 1, 1], [], []>} : vector<16x288xf32>, vector<288x128xf32>, vector<16x128xf32> -> vector<16x128xf32>
    %67 = arith.addf %66, %2 : vector<16x128xf32>
    %c1_89 = arith.constant 1 : index
    %c0_90 = arith.constant 0 : index
    %c0_91 = arith.constant 0 : index
    %68 = vector.load %arg5[%c1_89, %c0_90, %c0_91] : memref<2x16x128xf32, #tpu.memory_space<vmem>>, vector<1x16x128xf32>
    %69 = vector.shape_cast %68 : vector<1x16x128xf32> to vector<16x128xf32>
    %70 = vector.shape_cast %67 : vector<16x128xf32> to vector<1x16x128xf32>
    tpu.vector_store %arg5[%c1_89, %c0_90, %c0_91], %70 {strides = array<i32>} : memref<2x16x128xf32, #tpu.memory_space<vmem>>, vector<1x16x128xf32>,
    return
  }
  func.func @transform_0(%arg0: i32) -> (i32, i32, i32) {
    %c0_i32 = arith.constant 0 : i32
    %c0_i32_0 = arith.constant 0 : i32
    %c0_i32_1 = arith.constant 0 : i32
    %c0_i32_2 = arith.constant 0 : i32
    return %c0_i32, %c0_i32_0, %c0_i32_1 : i32, i32, i32
  }
  func.func @transform_1(%arg0: i32) -> (i32, i32) {
    %c0_i32 = arith.constant 0 : i32
    %c0_i32_0 = arith.constant 0 : i32
    %c0_i32_1 = arith.constant 0 : i32
    return %c0_i32, %c0_i32_0 : i32, i32
  }
  func.func @transform_2(%arg0: i32) -> (i32, i32) {
    %c0_i32 = arith.constant 0 : i32
    %c0_i32_0 = arith.constant 0 : i32
    %c0_i32_1 = arith.constant 0 : i32
    return %c0_i32, %c0_i32_0 : i32, i32
  }
  func.func @transform_3(%arg0: i32) -> (i32, i32) {
    %c0_i32 = arith.constant 0 : i32
    %c0_i32_0 = arith.constant 0 : i32
    %c0_i32_1 = arith.constant 0 : i32
    return %c0_i32, %c0_i32_0 : i32, i32
  }
  func.func @transform_4(%arg0: i32) -> (i32, i32, i32) {
    %c0_i32 = arith.constant 0 : i32
    %c0_i32_0 = arith.constant 0 : i32
    %c0_i32_1 = arith.constant 0 : i32
    %c0_i32_2 = arith.constant 0 : i32
    return %c0_i32, %c0_i32_0, %c0_i32_1 : i32, i32, i32
  }
}

</mosaic_0001>

<llo_original>
// kernel: saxspy_forward.1
$region0: #{saxspy_forward.1}
  #allocation0 [shape = 'u32[]', space=smem, size = 0x4, offset = 0x4, fixed_abs, tag = 'smem constant byte address 0x4 - core index']
  #allocation1 [shape = 'u32[144,128]{1,0:T(1,128)}', space=vmem, size = 0x12000, scoped, tag = 'internal scratch']
  #allocation2 [shape = 'f32[72,288]{1,0:T(8,128)}', space=vmem, size = 0x1b000, scoped, tag = 'scratch operand']
  %s0 = inlined_call_operand.vmem [shape: f32[2,8,342], index: 0, kind: input, shape index: {}]
  %s1 = inlined_call_operand.vmem [shape: f32[16,72], index: 1, kind: input, shape index: {}]
  %s2 = inlined_call_operand.vmem [shape: f32[288,128], index: 2, kind: input, shape index: {}]
  %s3 = inlined_call_operand.vmem [shape: f32[16,128], index: 3, kind: input, shape index: {}]
  %s4 = inlined_call_operand.vmem [shape: f32[2,16,128], index: 4, kind: output, shape index: {}]
  %s5 = sld [smem:[#allocation0]]
  $region26: #{saxspy_forward.1} parent=0
    _
  %s7 = ssub.s32 1, %s5
  %s8 = scalar_select 0, %s7, %s5
  // Predicated region
  $region2: #{saxspy_forward.1} parent=0 // pred_check
    _
  $region3: #{saxspy_forward.1} parent=0 // pred_check_branch
    %10 = sbr.rel (0) target = $region5
  $region4: #{saxspy_forward.1} parent=0 // pred_region
    _
  $region5: #{saxspy_forward.1} parent=0 // pred_fallthru
    _
  // Predicated region
  $region6: #{saxspy_forward.1} parent=0 // pred_check
    _
  $region7: #{saxspy_forward.1} parent=0 // pred_check_branch
    %12 = sbr.rel (0) target = $region9
  $region8: #{saxspy_forward.1} parent=0 // pred_region
    _
  $region9: #{saxspy_forward.1} parent=0 // pred_fallthru
    _
  // Predicated region
  $region10: #{saxspy_forward.1} parent=0 // pred_check
    _
  $region11: #{saxspy_forward.1} parent=0 // pred_check_branch
    %14 = sbr.rel (0) target = $region13
  $region12: #{saxspy_forward.1} parent=0 // pred_region
    _
  $region13: #{saxspy_forward.1} parent=0 // pred_fallthru
    _
  // Predicated region
  $region14: #{saxspy_forward.1} parent=0 // pred_check
    _
  $region15: #{saxspy_forward.1} parent=0 // pred_check_branch
    %16 = sbr.rel (0) target = $region17
  $region16: #{saxspy_forward.1} parent=0 // pred_region
    _
  $region17: #{saxspy_forward.1} parent=0 // pred_fallthru
    _
  %v17 = vld [vmem:[%s1] sm:$0xff]
  %v18 = vld [vmem:[%s1 + $0x8] sm:$0xff]
  %v19 = vld [vmem:[%s2] sm:$0xff]
  %v20 = vld [vmem:[%s2 + $0x8] sm:$0xff]
  %v21 = vld [vmem:[%s2 + $0x10] sm:$0xff]
  %v22 = vld [vmem:[%s2 + $0x18] sm:$0xff]
  %v23 = vld [vmem:[%s2 + $0x20] sm:$0xff]
  %v24 = vld [vmem:[%s2 + $0x28] sm:$0xff]
  %v25 = vld [vmem:[%s2 + $0x30] sm:$0xff]
  %v26 = vld [vmem:[%s2 + $0x38] sm:$0xff]
  %v27 = vld [vmem:[%s2 + $0x40] sm:$0xff]
  %v28 = vld [vmem:[%s2 + $0x48] sm:$0xff]
  %v29 = vld [vmem:[%s2 + $0x50] sm:$0xff]
  %v30 = vld [vmem:[%s2 + $0x58] sm:$0xff]
  %v31 = vld [vmem:[%s2 + $0x60] sm:$0xff]
  %v32 = vld [vmem:[%s2 + $0x68] sm:$0xff]
  %v33 = vld [vmem:[%s2 + $0x70] sm:$0xff]
  %v34 = vld [vmem:[%s2 + $0x78] sm:$0xff]
  %v35 = vld [vmem:[%s2 + $0x80] sm:$0xff]
  %v36 = vld [vmem:[%s2 + $0x88] sm:$0xff]
  %v37 = vld [vmem:[%s2 + $0x90] sm:$0xff]
  %v38 = vld [vmem:[%s2 + $0x98] sm:$0xff]
  %v39 = vld [vmem:[%s2 + $0xa0] sm:$0xff]
  %v40 = vld [vmem:[%s2 + $0xa8] sm:$0xff]
  %v41 = vld [vmem:[%s2 + $0xb0] sm:$0xff]
  %v42 = vld [vmem:[%s2 + $0xb8] sm:$0xff]
  %v43 = vld [vmem:[%s2 + $0xc0] sm:$0xff]
  %v44 = vld [vmem:[%s2 + $0xc8] sm:$0xff]
  %v45 = vld [vmem:[%s2 + $0xd0] sm:$0xff]
  %v46 = vld [vmem:[%s2 + $0xd8] sm:$0xff]
  %v47 = vld [vmem:[%s2 + $0xe0] sm:$0xff]
  %v48 = vld [vmem:[%s2 + $0xe8] sm:$0xff]
  %v49 = vld [vmem:[%s2 + $0xf0] sm:$0xff]
  %v50 = vld [vmem:[%s2 + $0xf8] sm:$0xff]
  %v51 = vld [vmem:[%s2 + $0x100] sm:$0xff]
  %v52 = vld [vmem:[%s2 + $0x108] sm:$0xff]
  %v53 = vld [vmem:[%s2 + $0x110] sm:$0xff]
  %v54 = vld [vmem:[%s2 + $0x118] sm:$0xff]
  %v55 = vld [vmem:[%s3] sm:$0xff]
  %v56 = vld [vmem:[%s3 + $0x8] sm:$0xff]
  %v57 = vld [vmem:[%s0] sm:$0xff]
  %v58 = vld [vmem:[%s0 + $0x8] sm:$0xff]
  %v59 = vld [vmem:[%s0 + $0x10] sm:$0xff]
  %60 = vst [vmem:[#allocation2] sm:$0xff] %v57
  %61 = vst [vmem:[#allocation2 + $0x8] sm:$0xff] %v58
  %vm62 = vcmask 261120
  %63 = vst.msk [vmem:[#allocation2 + $0x10] sm:$0xff] %vm62, %v59
  %v64 = vld [vmem:[%s0] sm:$0xff]
  %v65 = vld [vmem:[%s0 + $0x8] sm:$0xff]
  %v66 = vld [vmem:[%s0 + $0x10] sm:$0xff]
  %70 = vrot.lane.b32.xlu0 %v64, 127
  %v71 = vpop.permute.xlu0 %70
  %72 = vrot.lane.b32.xlu0 %v65, 127
  %v73 = vpop.permute.xlu0 %72
  %74 = vrot.lane.b32.xlu0 %v66, 127
  %v75 = vpop.permute.xlu0 %74
  %vm76 = vcmask 1039360
  %v77 = vsel %vm76, %v71, %v73
  %v78 = vsel %vm76, %v73, %v75
  %82 = vst [vmem:[#allocation2 + $0x18] sm:$0xff] %v77
  %83 = vst [vmem:[#allocation2 + $0x20] sm:$0xff] %v78
  %84 = vst.msk [vmem:[#allocation2 + $0x28] sm:$0xff] %vm62, %v75
  %v85 = vld [vmem:[%s0] sm:$0xff]
  %v86 = vld [vmem:[%s0 + $0x8] sm:$0xff]
  %v87 = vld [vmem:[%s0 + $0x10] sm:$0xff]
  %91 = vrot.lane.b32.xlu0 %v85, 126
  %v92 = vpop.permute.xlu0 %91
  %93 = vrot.lane.b32.xlu0 %v86, 126
  %v94 = vpop.permute.xlu0 %93
  %95 = vrot.lane.b32.xlu0 %v87, 126
  %v96 = vpop.permute.xlu0 %95
  %vm97 = vcmask 1031168
  %v98 = vsel %vm97, %v92, %v94
  %v99 = vsel %vm97, %v94, %v96
  %103 = vst [vmem:[#allocation2 + $0x30] sm:$0xff] %v98
  %104 = vst [vmem:[#allocation2 + $0x38] sm:$0xff] %v99
  %105 = vst.msk [vmem:[#allocation2 + $0x40] sm:$0xff] %vm62, %v96
  %v106 = vld [vmem:[%s0] sm:$0xff]
  %v107 = vld [vmem:[%s0 + $0x8] sm:$0xff]
  %v108 = vld [vmem:[%s0 + $0x10] sm:$0xff]
  %112 = vrot.lane.b32.xlu0 %v106, 110
  %v113 = vpop.permute.xlu0 %112
  %114 = vrot.lane.b32.xlu0 %v107, 110
  %v115 = vpop.permute.xlu0 %114
  %116 = vrot.lane.b32.xlu0 %v108, 110
  %v117 = vpop.permute.xlu0 %116
  %vm118 = vcmask 900096
  %v119 = vsel %vm118, %v113, %v115
  %v120 = vsel %vm118, %v115, %v117
  %124 = vst [vmem:[#allocation2 + $0x48] sm:$0xff] %v119
  %125 = vst [vmem:[#allocation2 + $0x50] sm:$0xff] %v120
  %126 = vst.msk [vmem:[#allocation2 + $0x58] sm:$0xff] %vm62, %v117
  %v127 = vld [vmem:[%s0] sm:$0xff]
  %v128 = vld [vmem:[%s0 + $0x8] sm:$0xff]
  %v129 = vld [vmem:[%s0 + $0x10] sm:$0xff]
  %133 = vrot.lane.b32.xlu0 %v127, 109
  %v134 = vpop.permute.xlu0 %133
  %135 = vrot.lane.b32.xlu0 %v128, 109
  %v136 = vpop.permute.xlu0 %135
  %137 = vrot.lane.b32.xlu0 %v129, 109
  %v138 = vpop.permute.xlu0 %137
  %vm139 = vcmask 891904
  %v140 = vsel %vm139, %v134, %v136
  %v141 = vsel %vm139, %v136, %v138
  %145 = vst [vmem:[#allocation2 + $0x60] sm:$0xff] %v140
  %146 = vst [vmem:[#allocation2 + $0x68] sm:$0xff] %v141
  %147 = vst.msk [vmem:[#allocation2 + $0x70] sm:$0xff] %vm62, %v138
  %v148 = vld [vmem:[%s0] sm:$0xff]
  %v149 = vld [vmem:[%s0 + $0x8] sm:$0xff]
  %v150 = vld [vmem:[%s0 + $0x10] sm:$0xff]
  %154 = vrot.lane.b32.xlu0 %v148, 108
  %v155 = vpop.permute.xlu0 %154
  %156 = vrot.lane.b32.xlu0 %v149, 108
  %v157 = vpop.permute.xlu0 %156
  %158 = vrot.lane.b32.xlu0 %v150, 108
  %v159 = vpop.permute.xlu0 %158
  %vm160 = vcmask 883712
  %v161 = vsel %vm160, %v155, %v157
  %v162 = vsel %vm160, %v157, %v159
  %166 = vst [vmem:[#allocation2 + $0x78] sm:$0xff] %v161
  %167 = vst [vmem:[#allocation2 + $0x80] sm:$0xff] %v162
  %168 = vst.msk [vmem:[#allocation2 + $0x88] sm:$0xff] %vm62, %v159
  %v169 = vld [vmem:[%s0] sm:$0xff]
  %v170 = vld [vmem:[%s0 + $0x8] sm:$0xff]
  %v171 = vld [vmem:[%s0 + $0x10] sm:$0xff]
  %175 = vrot.lane.b32.xlu0 %v169, 92
  %v176 = vpop.permute.xlu0 %175
  %177 = vrot.lane.b32.xlu0 %v170, 92
  %v178 = vpop.permute.xlu0 %177
  %179 = vrot.lane.b32.xlu0 %v171, 92
  %v180 = vpop.permute.xlu0 %179
  %vm181 = vcmask 752640
  %v182 = vsel %vm181, %v176, %v178
  %v183 = vsel %vm181, %v178, %v180
  %187 = vst [vmem:[#allocation2 + $0x90] sm:$0xff] %v182
  %188 = vst [vmem:[#allocation2 + $0x98] sm:$0xff] %v183
  %189 = vst.msk [vmem:[#allocation2 + $0xa0] sm:$0xff] %vm62, %v180
  %v190 = vld [vmem:[%s0] sm:$0xff]
  %v191 = vld [vmem:[%s0 + $0x8] sm:$0xff]
  %v192 = vld [vmem:[%s0 + $0x10] sm:$0xff]
  %196 = vrot.lane.b32.xlu0 %v190, 91
  %v197 = vpop.permute.xlu0 %196
  %198 = vrot.lane.b32.xlu0 %v191, 91
  %v199 = vpop.permute.xlu0 %198
  %200 = vrot.lane.b32.xlu0 %v192, 91
  %v201 = vpop.permute.xlu0 %200
  %vm202 = vcmask 744448
  %v203 = vsel %vm202, %v197, %v199
  %v204 = vsel %vm202, %v199, %v201
  %208 = vst [vmem:[#allocation2 + $0xa8] sm:$0xff] %v203
  %209 = vst [vmem:[#allocation2 + $0xb0] sm:$0xff] %v204
  %210 = vst.msk [vmem:[#allocation2 + $0xb8] sm:$0xff] %vm62, %v201
  %v211 = vld [vmem:[%s0] sm:$0xff]
  %v212 = vld [vmem:[%s0 + $0x8] sm:$0xff]
  %v213 = vld [vmem:[%s0 + $0x10] sm:$0xff]
  %217 = vrot.lane.b32.xlu0 %v211, 90
  %v218 = vpop.permute.xlu0 %217
  %219 = vrot.lane.b32.xlu0 %v212, 90
  %v220 = vpop.permute.xlu0 %219
  %221 = vrot.lane.b32.xlu0 %v213, 90
  %v222 = vpop.permute.xlu0 %221
  %vm223 = vcmask 736256
  %v224 = vsel %vm223, %v218, %v220
  %v225 = vsel %vm223, %v220, %v222
  %229 = vst [vmem:[#allocation2 + $0xc0] sm:$0xff] %v224
  %230 = vst [vmem:[#allocation2 + $0xc8] sm:$0xff] %v225
  %231 = vst.msk [vmem:[#allocation2 + $0xd0] sm:$0xff] %vm62, %v222
  %v232 = vld [vmem:[#allocation2] sm:$0xff]
  %v233 = vld [vmem:[#allocation2 + $0x8] sm:$0xff]
  %v234 = vld [vmem:[#allocation2 + $0x10] sm:$0xff]
  %v235 = vld [vmem:[#allocation2 + $0x18] sm:$0xff]
  %v236 = vld [vmem:[#allocation2 + $0x20] sm:$0xff]
  %v237 = vld [vmem:[#allocation2 + $0x28] sm:$0xff]
  %v238 = vld [vmem:[#allocation2 + $0x30] sm:$0xff]
  %v239 = vld [vmem:[#allocation2 + $0x38] sm:$0xff]
  %v240 = vld [vmem:[#allocation2 + $0x40] sm:$0xff]
  %v241 = vld [vmem:[#allocation2 + $0x48] sm:$0xff]
  %v242 = vld [vmem:[#allocation2 + $0x50] sm:$0xff]
  %v243 = vld [vmem:[#allocation2 + $0x58] sm:$0xff]
  %v244 = vld [vmem:[#allocation2 + $0x60] sm:$0xff]
  %v245 = vld [vmem:[#allocation2 + $0x68] sm:$0xff]
  %v246 = vld [vmem:[#allocation2 + $0x70] sm:$0xff]
  %v247 = vld [vmem:[#allocation2 + $0x78] sm:$0xff]
  %v248 = vld [vmem:[#allocation2 + $0x80] sm:$0xff]
  %v249 = vld [vmem:[#allocation2 + $0x88] sm:$0xff]
  %v250 = vld [vmem:[#allocation2 + $0x90] sm:$0xff]
  %v251 = vld [vmem:[#allocation2 + $0x98] sm:$0xff]
  %v252 = vld [vmem:[#allocation2 + $0xa0] sm:$0xff]
  %v253 = vld [vmem:[#allocation2 + $0xa8] sm:$0xff]
  %v254 = vld [vmem:[#allocation2 + $0xb0] sm:$0xff]
  %v255 = vld [vmem:[#allocation2 + $0xb8] sm:$0xff]
  %v256 = vld [vmem:[#allocation2 + $0xc0] sm:$0xff]
  %v257 = vld [vmem:[#allocation2 + $0xc8] sm:$0xff]
  %v258 = vld [vmem:[#allocation2 + $0xd0] sm:$0xff]
  %vm259 = vcmask 588800
  %v261 = vsel %vm259, %v17, 0
  %v264 = vsel %vm259, %v18, 0
  %266 = vmatprep.subr.mxu0 0.0
  %267 = vmatpush1.msra.mxu0 0.0
  %268 = vmatprep.subr.mxu0 0.0
  %269 = vmatpush1.msra.mxu0 0.0
  %270 = vmatprep.subr.mxu0 0.0
  %271 = vmatpush1.msra.mxu0 0.0
  %272 = vmatprep.subr.mxu0 0.0
  %273 = vmatpush1.msra.mxu0 0.0
  %274 = vmatprep.subr.mxu0 0.0
  %275 = vmatpush1.msra.mxu0 0.0
  %276 = vmatprep.subr.mxu0 0.0
  %277 = vmatpush1.msra.mxu0 0.0
  %278 = vmatprep.subr.mxu0 0.0
  %279 = vmatpush1.msra.mxu0 0.0
  %280 = vmatprep.subr.mxu0 %v257
  %281 = vmatpush1.msra.mxu0 %v256
  %282 = vmatprep.subr.mxu0 %v254
  %283 = vmatpush1.msra.mxu0 %v253
  %284 = vmatprep.subr.mxu0 %v251
  %285 = vmatpush1.msra.mxu0 %v250
  %286 = vmatprep.subr.mxu0 %v248
  %287 = vmatpush1.msra.mxu0 %v247
  %288 = vmatprep.subr.mxu0 %v245
  %289 = vmatpush1.msra.mxu0 %v244
  %290 = vmatprep.subr.mxu0 %v242
  %291 = vmatpush1.msra.mxu0 %v241
  %292 = vmatprep.subr.mxu0 %v239
  %293 = vmatpush1.msra.mxu0 %v238
  %294 = vmatprep.subr.mxu0 %v236
  %295 = vmatpush1.msra.mxu0 %v235
  %296 = vmatprep.subr.mxu0 %v233
  %297 = vmatpush1.msra.mxu0 %v232
  %298 = vmatprep.subr.mxu0 0.0
  %299 = vmatpush2.msra.mxu0 0.0
  %300 = vmatprep.subr.mxu0 0.0
  %301 = vmatpush2.msra.mxu0 0.0
  %302 = vmatprep.subr.mxu0 0.0
  %303 = vmatpush2.msra.mxu0 0.0
  %304 = vmatprep.subr.mxu0 0.0
  %305 = vmatpush2.msra.mxu0 0.0
  %306 = vmatprep.subr.mxu0 0.0
  %307 = vmatpush2.msra.mxu0 0.0
  %308 = vmatprep.subr.mxu0 0.0
  %309 = vmatpush2.msra.mxu0 0.0
  %310 = vmatprep.subr.mxu0 0.0
  %311 = vmatpush2.msra.mxu0 0.0
  %312 = vmatprep.subr.mxu0 0.0
  %313 = vmatpush2.msra.mxu0 0.0
  %314 = vmatprep.subr.mxu0 0.0
  %315 = vmatpush2.msra.mxu0 0.0
  %316 = vmatprep.subr.mxu0 0.0
  %317 = vmatpush2.msra.mxu0 0.0
  %318 = vmatprep.subr.mxu0 0.0
  %319 = vmatpush2.msra.mxu0 0.0
  %320 = vmatprep.subr.mxu0 0.0
  %321 = vmatpush2.msra.mxu0 0.0
  %322 = vmatprep.subr.mxu0 0.0
  %323 = vmatpush2.msra.mxu0 0.0
  %324 = vmatprep.subr.mxu0 0.0
  %325 = vmatpush2.msra.mxu0 0.0
  %326 = vmatprep.subr.mxu0 0.0
  %327 = vmatpush2.msra.mxu0 0.0
  %328 = vmatprep.subr.mxu0 0.0
  %329 = vmatpush2.msra.mxu0 0.0
  %330 = vmatprep.mubr.f32.mxu0 0.0
  %331 = vmatmul.mubr.f32.gmra.mxu0 %v261
  %v332 = vpop.f32.mrf.mxu0
  %v333 = vadd.f32 0.0, %v332
  %v334 = vpop.f32.mrf.mxu0
  %v335 = vadd.f32 0.0, %v334
  %336 = vmatprep.mubr.f32.mxu0 0.0
  %337 = vmatmul.mubr.f32.gmra.mxu0 %v264
  %v338 = vpop.f32.mrf.mxu0
  %v339 = vadd.f32 0.0, %v338
  %v340 = vpop.f32.mrf.mxu0
  %v341 = vadd.f32 0.0, %v340
  %342 = vdwg.mxu0
  %343 = vmatprep.subr.mxu0 0.0
  %344 = vmatpush1.msra.mxu0 0.0
  %345 = vmatprep.subr.mxu0 0.0
  %346 = vmatpush1.msra.mxu0 0.0
  %347 = vmatprep.subr.mxu0 0.0
  %348 = vmatpush1.msra.mxu0 0.0
  %349 = vmatprep.subr.mxu0 0.0
  %350 = vmatpush1.msra.mxu0 0.0
  %351 = vmatprep.subr.mxu0 0.0
  %352 = vmatpush1.msra.mxu0 0.0
  %353 = vmatprep.subr.mxu0 0.0
  %354 = vmatpush1.msra.mxu0 0.0
  %355 = vmatprep.subr.mxu0 0.0
  %356 = vmatpush1.msra.mxu0 0.0
  %357 = vmatprep.subr.mxu0 0.0
  %358 = vmatpush1.msra.mxu0 %v258
  %359 = vmatprep.subr.mxu0 0.0
  %360 = vmatpush1.msra.mxu0 %v255
  %361 = vmatprep.subr.mxu0 0.0
  %362 = vmatpush1.msra.mxu0 %v252
  %363 = vmatprep.subr.mxu0 0.0
  %364 = vmatpush1.msra.mxu0 %v249
  %365 = vmatprep.subr.mxu0 0.0
  %366 = vmatpush1.msra.mxu0 %v246
  %367 = vmatprep.subr.mxu0 0.0
  %368 = vmatpush1.msra.mxu0 %v243
  %369 = vmatprep.subr.mxu0 0.0
  %370 = vmatpush1.msra.mxu0 %v240
  %371 = vmatprep.subr.mxu0 0.0
  %372 = vmatpush1.msra.mxu0 %v237
  %373 = vmatprep.subr.mxu0 0.0
  %374 = vmatpush1.msra.mxu0 %v234
  %375 = vmatprep.subr.mxu0 0.0
  %376 = vmatpush2.msra.mxu0 0.0
  %377 = vmatprep.subr.mxu0 0.0
  %378 = vmatpush2.msra.mxu0 0.0
  %379 = vmatprep.subr.mxu0 0.0
  %380 = vmatpush2.msra.mxu0 0.0
  %381 = vmatprep.subr.mxu0 0.0
  %382 = vmatpush2.msra.mxu0 0.0
  %383 = vmatprep.subr.mxu0 0.0
  %384 = vmatpush2.msra.mxu0 0.0
  %385 = vmatprep.subr.mxu0 0.0
  %386 = vmatpush2.msra.mxu0 0.0
  %387 = vmatprep.subr.mxu0 0.0
  %388 = vmatpush2.msra.mxu0 0.0
  %389 = vmatprep.subr.mxu0 0.0
  %390 = vmatpush2.msra.mxu0 0.0
  %391 = vmatprep.subr.mxu0 0.0
  %392 = vmatpush2.msra.mxu0 0.0
  %393 = vmatprep.subr.mxu0 0.0
  %394 = vmatpush2.msra.mxu0 0.0
  %395 = vmatprep.subr.mxu0 0.0
  %396 = vmatpush2.msra.mxu0 0.0
  %397 = vmatprep.subr.mxu0 0.0
  %398 = vmatpush2.msra.mxu0 0.0
  %399 = vmatprep.subr.mxu0 0.0
  %400 = vmatpush2.msra.mxu0 0.0
  %401 = vmatprep.subr.mxu0 0.0
  %402 = vmatpush2.msra.mxu0 0.0
  %403 = vmatprep.subr.mxu0 0.0
  %404 = vmatpush2.msra.mxu0 0.0
  %405 = vmatprep.subr.mxu0 0.0
  %406 = vmatpush2.msra.mxu0 0.0
  %407 = vmatprep.mubr.f32.mxu0 0.0
  %408 = vmatmul.mubr.f32.gmra.mxu0 %v261
  %v409 = vpop.f32.mrf.mxu0
  %v410 = vadd.f32 0.0, %v409
  %v411 = vpop.f32.mrf.mxu0
  %412 = vmatprep.mubr.f32.mxu0 0.0
  %413 = vmatmul.mubr.f32.gmra.mxu0 %v264
  %v414 = vpop.f32.mrf.mxu0
  %v415 = vadd.f32 0.0, %v414
  %v416 = vpop.f32.mrf.mxu0
  %417 = vdwg.mxu0
  %v419 = vsel %vm62, %v410, 0
  %v422 = vsel %vm62, %v415, 0
  %424 = vmatprep.subr.mxu0 0.0
  %425 = vmatpush1.msra.mxu0 %v34
  %426 = vmatprep.subr.mxu0 0.0
  %427 = vmatpush1.msra.mxu0 %v33
  %428 = vmatprep.subr.mxu0 0.0
  %429 = vmatpush1.msra.mxu0 %v32
  %430 = vmatprep.subr.mxu0 0.0
  %431 = vmatpush1.msra.mxu0 %v31
  %432 = vmatprep.subr.mxu0 0.0
  %433 = vmatpush1.msra.mxu0 %v30
  %434 = vmatprep.subr.mxu0 0.0
  %435 = vmatpush1.msra.mxu0 %v29
  %436 = vmatprep.subr.mxu0 0.0
  %437 = vmatpush1.msra.mxu0 %v28
  %438 = vmatprep.subr.mxu0 0.0
  %439 = vmatpush1.msra.mxu0 %v27
  %440 = vmatprep.subr.mxu0 0.0
  %441 = vmatpush1.msra.mxu0 %v26
  %442 = vmatprep.subr.mxu0 0.0
  %443 = vmatpush1.msra.mxu0 %v25
  %444 = vmatprep.subr.mxu0 0.0
  %445 = vmatpush1.msra.mxu0 %v24
  %446 = vmatprep.subr.mxu0 0.0
  %447 = vmatpush1.msra.mxu0 %v23
  %448 = vmatprep.subr.mxu0 0.0
  %449 = vmatpush1.msra.mxu0 %v22
  %450 = vmatprep.subr.mxu0 0.0
  %451 = vmatpush1.msra.mxu0 %v21
  %452 = vmatprep.subr.mxu0 0.0
  %453 = vmatpush1.msra.mxu0 %v20
  %454 = vmatprep.subr.mxu0 0.0
  %455 = vmatpush1.msra.mxu0 %v19
  %456 = vmatprep.subr.mxu0 0.0
  %457 = vmatpush2.msra.mxu0 %v50
  %458 = vmatprep.subr.mxu0 0.0
  %459 = vmatpush2.msra.mxu0 %v49
  %460 = vmatprep.subr.mxu0 0.0
  %461 = vmatpush2.msra.mxu0 %v48
  %462 = vmatprep.subr.mxu0 0.0
  %463 = vmatpush2.msra.mxu0 %v47
  %464 = vmatprep.subr.mxu0 0.0
  %465 = vmatpush2.msra.mxu0 %v46
  %466 = vmatprep.subr.mxu0 0.0
  %467 = vmatpush2.msra.mxu0 %v45
  %468 = vmatprep.subr.mxu0 0.0
  %469 = vmatpush2.msra.mxu0 %v44
  %470 = vmatprep.subr.mxu0 0.0
  %471 = vmatpush2.msra.mxu0 %v43
  %472 = vmatprep.subr.mxu0 0.0
  %473 = vmatpush2.msra.mxu0 %v42
  %474 = vmatprep.subr.mxu0 0.0
  %475 = vmatpush2.msra.mxu0 %v41
  %476 = vmatprep.subr.mxu0 0.0
  %477 = vmatpush2.msra.mxu0 %v40
  %478 = vmatprep.subr.mxu0 0.0
  %479 = vmatpush2.msra.mxu0 %v39
  %480 = vmatprep.subr.mxu0 0.0
  %481 = vmatpush2.msra.mxu0 %v38
  %482 = vmatprep.subr.mxu0 0.0
  %483 = vmatpush2.msra.mxu0 %v37
  %484 = vmatprep.subr.mxu0 0.0
  %485 = vmatpush2.msra.mxu0 %v36
  %486 = vmatprep.subr.mxu0 0.0
  %487 = vmatpush2.msra.mxu0 %v35
  %488 = vmatprep.mubr.f32.mxu0 %v335
  %489 = vmatmul.mubr.f32.gmra.mxu0 %v333
  %v490 = vpop.f32.mrf.mxu0
  %v491 = vadd.f32 %v55, %v490
  %v492 = vpop.f32.mrf.mxu0
  %493 = vmatprep.mubr.f32.mxu0 %v341
  %494 = vmatmul.mubr.f32.gmra.mxu0 %v339
  %v495 = vpop.f32.mrf.mxu0
  %v496 = vadd.f32 %v56, %v495
  %v497 = vpop.f32.mrf.mxu0
  %498 = vdwg.mxu0
  %499 = vmatprep.subr.mxu0 0.0
  %500 = vmatpush1.msra.mxu0 0.0
  %501 = vmatprep.subr.mxu0 0.0
  %502 = vmatpush1.msra.mxu0 0.0
  %503 = vmatprep.subr.mxu0 0.0
  %504 = vmatpush1.msra.mxu0 0.0
  %505 = vmatprep.subr.mxu0 0.0
  %506 = vmatpush1.msra.mxu0 0.0
  %507 = vmatprep.subr.mxu0 0.0
  %508 = vmatpush1.msra.mxu0 0.0
  %509 = vmatprep.subr.mxu0 0.0
  %510 = vmatpush1.msra.mxu0 0.0
  %511 = vmatprep.subr.mxu0 0.0
  %512 = vmatpush1.msra.mxu0 0.0
  %513 = vmatprep.subr.mxu0 0.0
  %514 = vmatpush1.msra.mxu0 0.0
  %515 = vmatprep.subr.mxu0 0.0
  %516 = vmatpush1.msra.mxu0 0.0
  %517 = vmatprep.subr.mxu0 0.0
  %518 = vmatpush1.msra.mxu0 0.0
  %519 = vmatprep.subr.mxu0 0.0
  %520 = vmatpush1.msra.mxu0 0.0
  %521 = vmatprep.subr.mxu0 0.0
  %522 = vmatpush1.msra.mxu0 0.0
  %523 = vmatprep.subr.mxu0 0.0
  %524 = vmatpush1.msra.mxu0 %v54
  %525 = vmatprep.subr.mxu0 0.0
  %526 = vmatpush1.msra.mxu0 %v53
  %527 = vmatprep.subr.mxu0 0.0
  %528 = vmatpush1.msra.mxu0 %v52
  %529 = vmatprep.subr.mxu0 0.0
  %530 = vmatpush1.msra.mxu0 %v51
  %531 = vmatprep.subr.mxu0 0.0
  %532 = vmatpush2.msra.mxu0 0.0
  %533 = vmatprep.subr.mxu0 0.0
  %534 = vmatpush2.msra.mxu0 0.0
  %535 = vmatprep.subr.mxu0 0.0
  %536 = vmatpush2.msra.mxu0 0.0
  %537 = vmatprep.subr.mxu0 0.0
  %538 = vmatpush2.msra.mxu0 0.0
  %539 = vmatprep.subr.mxu0 0.0
  %540 = vmatpush2.msra.mxu0 0.0
  %541 = vmatprep.subr.mxu0 0.0
  %542 = vmatpush2.msra.mxu0 0.0
  %543 = vmatprep.subr.mxu0 0.0
  %544 = vmatpush2.msra.mxu0 0.0
  %545 = vmatprep.subr.mxu0 0.0
  %546 = vmatpush2.msra.mxu0 0.0
  %547 = vmatprep.subr.mxu0 0.0
  %548 = vmatpush2.msra.mxu0 0.0
  %549 = vmatprep.subr.mxu0 0.0
  %550 = vmatpush2.msra.mxu0 0.0
  %551 = vmatprep.subr.mxu0 0.0
  %552 = vmatpush2.msra.mxu0 0.0
  %553 = vmatprep.subr.mxu0 0.0
  %554 = vmatpush2.msra.mxu0 0.0
  %555 = vmatprep.subr.mxu0 0.0
  %556 = vmatpush2.msra.mxu0 0.0
  %557 = vmatprep.subr.mxu0 0.0
  %558 = vmatpush2.msra.mxu0 0.0
  %559 = vmatprep.subr.mxu0 0.0
  %560 = vmatpush2.msra.mxu0 0.0
  %561 = vmatprep.subr.mxu0 0.0
  %562 = vmatpush2.msra.mxu0 0.0
  %563 = vmatprep.mubr.f32.mxu0 0.0
  %564 = vmatmul.mubr.f32.gmra.mxu0 %v419
  %v565 = vpop.f32.mrf.mxu0
  %v566 = vadd.f32 %v491, %v565
  %v567 = vpop.f32.mrf.mxu0
  %568 = vmatprep.mubr.f32.mxu0 0.0
  %569 = vmatmul.mubr.f32.gmra.mxu0 %v422
  %v570 = vpop.f32.mrf.mxu0
  %v571 = vadd.f32 %v496, %v570
  %v572 = vpop.f32.mrf.mxu0
  %573 = vdwg.mxu0
  %574 = vst [vmem:[%s4] sm:$0xff] %v566
  %575 = vst [vmem:[%s4 + $0x8] sm:$0xff] %v571
  %s576 = scalar_lea.vmem %s0, 24
  %v577 = vld [vmem:[%s576] sm:$0xff]
  %v578 = vld [vmem:[%s576 + $0x8] sm:$0xff]
  %v579 = vld [vmem:[%s576 + $0x10] sm:$0xff]
  %580 = vst [vmem:[#allocation2] sm:$0xff] %v577
  %581 = vst [vmem:[#allocation2 + $0x8] sm:$0xff] %v578
  %582 = vst.msk [vmem:[#allocation2 + $0x10] sm:$0xff] %vm62, %v579
  %v583 = vld [vmem:[%s576] sm:$0xff]
  %v584 = vld [vmem:[%s576 + $0x8] sm:$0xff]
  %v585 = vld [vmem:[%s576 + $0x10] sm:$0xff]
  %589 = vrot.lane.b32.xlu0 %v583, 127
  %v590 = vpop.permute.xlu0 %589
  %591 = vrot.lane.b32.xlu0 %v584, 127
  %v592 = vpop.permute.xlu0 %591
  %593 = vrot.lane.b32.xlu0 %v585, 127
  %v594 = vpop.permute.xlu0 %593
  %v595 = vsel %vm76, %v590, %v592
  %v596 = vsel %vm76, %v592, %v594
  %600 = vst [vmem:[#allocation2 + $0x18] sm:$0xff] %v595
  %601 = vst [vmem:[#allocation2 + $0x20] sm:$0xff] %v596
  %602 = vst.msk [vmem:[#allocation2 + $0x28] sm:$0xff] %vm62, %v594
  %v603 = vld [vmem:[%s576] sm:$0xff]
  %v604 = vld [vmem:[%s576 + $0x8] sm:$0xff]
  %v605 = vld [vmem:[%s576 + $0x10] sm:$0xff]
  %609 = vrot.lane.b32.xlu0 %v603, 126
  %v610 = vpop.permute.xlu0 %609
  %611 = vrot.lane.b32.xlu0 %v604, 126
  %v612 = vpop.permute.xlu0 %611
  %613 = vrot.lane.b32.xlu0 %v605, 126
  %v614 = vpop.permute.xlu0 %613
  %v615 = vsel %vm97, %v610, %v612
  %v616 = vsel %vm97, %v612, %v614
  %620 = vst [vmem:[#allocation2 + $0x30] sm:$0xff] %v615
  %621 = vst [vmem:[#allocation2 + $0x38] sm:$0xff] %v616
  %622 = vst.msk [vmem:[#allocation2 + $0x40] sm:$0xff] %vm62, %v614
  %v623 = vld [vmem:[%s576] sm:$0xff]
  %v624 = vld [vmem:[%s576 + $0x8] sm:$0xff]
  %v625 = vld [vmem:[%s576 + $0x10] sm:$0xff]
  %629 = vrot.lane.b32.xlu0 %v623, 110
  %v630 = vpop.permute.xlu0 %629
  %631 = vrot.lane.b32.xlu0 %v624, 110
  %v632 = vpop.permute.xlu0 %631
  %633 = vrot.lane.b32.xlu0 %v625, 110
  %v634 = vpop.permute.xlu0 %633
  %v635 = vsel %vm118, %v630, %v632
  %v636 = vsel %vm118, %v632, %v634
  %640 = vst [vmem:[#allocation2 + $0x48] sm:$0xff] %v635
  %641 = vst [vmem:[#allocation2 + $0x50] sm:$0xff] %v636
  %642 = vst.msk [vmem:[#allocation2 + $0x58] sm:$0xff] %vm62, %v634
  %v643 = vld [vmem:[%s576] sm:$0xff]
  %v644 = vld [vmem:[%s576 + $0x8] sm:$0xff]
  %v645 = vld [vmem:[%s576 + $0x10] sm:$0xff]
  %649 = vrot.lane.b32.xlu0 %v643, 109
  %v650 = vpop.permute.xlu0 %649
  %651 = vrot.lane.b32.xlu0 %v644, 109
  %v652 = vpop.permute.xlu0 %651
  %653 = vrot.lane.b32.xlu0 %v645, 109
  %v654 = vpop.permute.xlu0 %653
  %v655 = vsel %vm139, %v650, %v652
  %v656 = vsel %vm139, %v652, %v654
  %660 = vst [vmem:[#allocation2 + $0x60] sm:$0xff] %v655
  %661 = vst [vmem:[#allocation2 + $0x68] sm:$0xff] %v656
  %662 = vst.msk [vmem:[#allocation2 + $0x70] sm:$0xff] %vm62, %v654
  %v663 = vld [vmem:[%s576] sm:$0xff]
  %v664 = vld [vmem:[%s576 + $0x8] sm:$0xff]
  %v665 = vld [vmem:[%s576 + $0x10] sm:$0xff]
  %669 = vrot.lane.b32.xlu0 %v663, 108
  %v670 = vpop.permute.xlu0 %669
  %671 = vrot.lane.b32.xlu0 %v664, 108
  %v672 = vpop.permute.xlu0 %671
  %673 = vrot.lane.b32.xlu0 %v665, 108
  %v674 = vpop.permute.xlu0 %673
  %v675 = vsel %vm160, %v670, %v672
  %v676 = vsel %vm160, %v672, %v674
  %680 = vst [vmem:[#allocation2 + $0x78] sm:$0xff] %v675
  %681 = vst [vmem:[#allocation2 + $0x80] sm:$0xff] %v676
  %682 = vst.msk [vmem:[#allocation2 + $0x88] sm:$0xff] %vm62, %v674
  %v683 = vld [vmem:[%s576] sm:$0xff]
  %v684 = vld [vmem:[%s576 + $0x8] sm:$0xff]
  %v685 = vld [vmem:[%s576 + $0x10] sm:$0xff]
  %689 = vrot.lane.b32.xlu0 %v683, 92
  %v690 = vpop.permute.xlu0 %689
  %691 = vrot.lane.b32.xlu0 %v684, 92
  %v692 = vpop.permute.xlu0 %691
  %693 = vrot.lane.b32.xlu0 %v685, 92
  %v694 = vpop.permute.xlu0 %693
  %v695 = vsel %vm181, %v690, %v692
  %v696 = vsel %vm181, %v692, %v694
  %700 = vst [vmem:[#allocation2 + $0x90] sm:$0xff] %v695
  %701 = vst [vmem:[#allocation2 + $0x98] sm:$0xff] %v696
  %702 = vst.msk [vmem:[#allocation2 + $0xa0] sm:$0xff] %vm62, %v694
  %v703 = vld [vmem:[%s576] sm:$0xff]
  %v704 = vld [vmem:[%s576 + $0x8] sm:$0xff]
  %v705 = vld [vmem:[%s576 + $0x10] sm:$0xff]
  %709 = vrot.lane.b32.xlu0 %v703, 91
  %v710 = vpop.permute.xlu0 %709
  %711 = vrot.lane.b32.xlu0 %v704, 91
  %v712 = vpop.permute.xlu0 %711
  %713 = vrot.lane.b32.xlu0 %v705, 91
  %v714 = vpop.permute.xlu0 %713
  %v715 = vsel %vm202, %v710, %v712
  %v716 = vsel %vm202, %v712, %v714
  %720 = vst [vmem:[#allocation2 + $0xa8] sm:$0xff] %v715
  %721 = vst [vmem:[#allocation2 + $0xb0] sm:$0xff] %v716
  %722 = vst.msk [vmem:[#allocation2 + $0xb8] sm:$0xff] %vm62, %v714
  %v723 = vld [vmem:[%s576] sm:$0xff]
  %v724 = vld [vmem:[%s576 + $0x8] sm:$0xff]
  %v725 = vld [vmem:[%s576 + $0x10] sm:$0xff]
  %729 = vrot.lane.b32.xlu0 %v723, 90
  %v730 = vpop.permute.xlu0 %729
  %731 = vrot.lane.b32.xlu0 %v724, 90
  %v732 = vpop.permute.xlu0 %731
  %733 = vrot.lane.b32.xlu0 %v725, 90
  %v734 = vpop.permute.xlu0 %733
  %v735 = vsel %vm223, %v730, %v732
  %v736 = vsel %vm223, %v732, %v734
  %740 = vst [vmem:[#allocation2 + $0xc0] sm:$0xff] %v735
  %741 = vst [vmem:[#allocation2 + $0xc8] sm:$0xff] %v736
  %742 = vst.msk [vmem:[#allocation2 + $0xd0] sm:$0xff] %vm62, %v734
  %v743 = vld [vmem:[#allocation2] sm:$0xff]
  %v744 = vld [vmem:[#allocation2 + $0x8] sm:$0xff]
  %v745 = vld [vmem:[#allocation2 + $0x10] sm:$0xff]
  %v746 = vld [vmem:[#allocation2 + $0x18] sm:$0xff]
  %v747 = vld [vmem:[#allocation2 + $0x20] sm:$0xff]
  %v748 = vld [vmem:[#allocation2 + $0x28] sm:$0xff]
  %v749 = vld [vmem:[#allocation2 + $0x30] sm:$0xff]
  %v750 = vld [vmem:[#allocation2 + $0x38] sm:$0xff]
  %v751 = vld [vmem:[#allocation2 + $0x40] sm:$0xff]
  %v752 = vld [vmem:[#allocation2 + $0x48] sm:$0xff]
  %v753 = vld [vmem:[#allocation2 + $0x50] sm:$0xff]
  %v754 = vld [vmem:[#allocation2 + $0x58] sm:$0xff]
  %v755 = vld [vmem:[#allocation2 + $0x60] sm:$0xff]
  %v756 = vld [vmem:[#allocation2 + $0x68] sm:$0xff]
  %v757 = vld [vmem:[#allocation2 + $0x70] sm:$0xff]
  %v758 = vld [vmem:[#allocation2 + $0x78] sm:$0xff]
  %v759 = vld [vmem:[#allocation2 + $0x80] sm:$0xff]
  %v760 = vld [vmem:[#allocation2 + $0x88] sm:$0xff]
  %v761 = vld [vmem:[#allocation2 + $0x90] sm:$0xff]
  %v762 = vld [vmem:[#allocation2 + $0x98] sm:$0xff]
  %v763 = vld [vmem:[#allocation2 + $0xa0] sm:$0xff]
  %v764 = vld [vmem:[#allocation2 + $0xa8] sm:$0xff]
  %v765 = vld [vmem:[#allocation2 + $0xb0] sm:$0xff]
  %v766 = vld [vmem:[#allocation2 + $0xb8] sm:$0xff]
  %v767 = vld [vmem:[#allocation2 + $0xc0] sm:$0xff]
  %v768 = vld [vmem:[#allocation2 + $0xc8] sm:$0xff]
  %v769 = vld [vmem:[#allocation2 + $0xd0] sm:$0xff]
  %770 = vmatprep.subr.mxu0 0.0
  %771 = vmatpush1.msra.mxu0 0.0
  %772 = vmatprep.subr.mxu0 0.0
  %773 = vmatpush1.msra.mxu0 0.0
  %774 = vmatprep.subr.mxu0 0.0
  %775 = vmatpush1.msra.mxu0 0.0
  %776 = vmatprep.subr.mxu0 0.0
  %777 = vmatpush1.msra.mxu0 0.0
  %778 = vmatprep.subr.mxu0 0.0
  %779 = vmatpush1.msra.mxu0 0.0
  %780 = vmatprep.subr.mxu0 0.0
  %781 = vmatpush1.msra.mxu0 0.0
  %782 = vmatprep.subr.mxu0 0.0
  %783 = vmatpush1.msra.mxu0 0.0
  %784 = vmatprep.subr.mxu0 %v768
  %785 = vmatpush1.msra.mxu0 %v767
  %786 = vmatprep.subr.mxu0 %v765
  %787 = vmatpush1.msra.mxu0 %v764
  %788 = vmatprep.subr.mxu0 %v762
  %789 = vmatpush1.msra.mxu0 %v761
  %790 = vmatprep.subr.mxu0 %v759
  %791 = vmatpush1.msra.mxu0 %v758
  %792 = vmatprep.subr.mxu0 %v756
  %793 = vmatpush1.msra.mxu0 %v755
  %794 = vmatprep.subr.mxu0 %v753
  %795 = vmatpush1.msra.mxu0 %v752
  %796 = vmatprep.subr.mxu0 %v750
  %797 = vmatpush1.msra.mxu0 %v749
  %798 = vmatprep.subr.mxu0 %v747
  %799 = vmatpush1.msra.mxu0 %v746
  %800 = vmatprep.subr.mxu0 %v744
  %801 = vmatpush1.msra.mxu0 %v743
  %802 = vmatprep.subr.mxu0 0.0
  %803 = vmatpush2.msra.mxu0 0.0
  %804 = vmatprep.subr.mxu0 0.0
  %805 = vmatpush2.msra.mxu0 0.0
  %806 = vmatprep.subr.mxu0 0.0
  %807 = vmatpush2.msra.mxu0 0.0
  %808 = vmatprep.subr.mxu0 0.0
  %809 = vmatpush2.msra.mxu0 0.0
  %810 = vmatprep.subr.mxu0 0.0
  %811 = vmatpush2.msra.mxu0 0.0
  %812 = vmatprep.subr.mxu0 0.0
  %813 = vmatpush2.msra.mxu0 0.0
  %814 = vmatprep.subr.mxu0 0.0
  %815 = vmatpush2.msra.mxu0 0.0
  %816 = vmatprep.subr.mxu0 0.0
  %817 = vmatpush2.msra.mxu0 0.0
  %818 = vmatprep.subr.mxu0 0.0
  %819 = vmatpush2.msra.mxu0 0.0
  %820 = vmatprep.subr.mxu0 0.0
  %821 = vmatpush2.msra.mxu0 0.0
  %822 = vmatprep.subr.mxu0 0.0
  %823 = vmatpush2.msra.mxu0 0.0
  %824 = vmatprep.subr.mxu0 0.0
  %825 = vmatpush2.msra.mxu0 0.0
  %826 = vmatprep.subr.mxu0 0.0
  %827 = vmatpush2.msra.mxu0 0.0
  %828 = vmatprep.subr.mxu0 0.0
  %829 = vmatpush2.msra.mxu0 0.0
  %830 = vmatprep.subr.mxu0 0.0
  %831 = vmatpush2.msra.mxu0 0.0
  %832 = vmatprep.subr.mxu0 0.0
  %833 = vmatpush2.msra.mxu0 0.0
  %834 = vmatprep.mubr.f32.mxu0 0.0
  %835 = vmatmul.mubr.f32.gmra.mxu0 %v261
  %v836 = vpop.f32.mrf.mxu0
  %v837 = vadd.f32 0.0, %v836
  %v838 = vpop.f32.mrf.mxu0
  %v839 = vadd.f32 0.0, %v838
  %840 = vmatprep.mubr.f32.mxu0 0.0
  %841 = vmatmul.mubr.f32.gmra.mxu0 %v264
  %v842 = vpop.f32.mrf.mxu0
  %v843 = vadd.f32 0.0, %v842
  %v844 = vpop.f32.mrf.mxu0
  %v845 = vadd.f32 0.0, %v844
  %846 = vdwg.mxu0
  %847 = vmatprep.subr.mxu0 0.0
  %848 = vmatpush1.msra.mxu0 0.0
  %849 = vmatprep.subr.mxu0 0.0
  %850 = vmatpush1.msra.mxu0 0.0
  %851 = vmatprep.subr.mxu0 0.0
  %852 = vmatpush1.msra.mxu0 0.0
  %853 = vmatprep.subr.mxu0 0.0
  %854 = vmatpush1.msra.mxu0 0.0
  %855 = vmatprep.subr.mxu0 0.0
  %856 = vmatpush1.msra.mxu0 0.0
  %857 = vmatprep.subr.mxu0 0.0
  %858 = vmatpush1.msra.mxu0 0.0
  %859 = vmatprep.subr.mxu0 0.0
  %860 = vmatpush1.msra.mxu0 0.0
  %861 = vmatprep.subr.mxu0 0.0
  %862 = vmatpush1.msra.mxu0 %v769
  %863 = vmatprep.subr.mxu0 0.0
  %864 = vmatpush1.msra.mxu0 %v766
  %865 = vmatprep.subr.mxu0 0.0
  %866 = vmatpush1.msra.mxu0 %v763
  %867 = vmatprep.subr.mxu0 0.0
  %868 = vmatpush1.msra.mxu0 %v760
  %869 = vmatprep.subr.mxu0 0.0
  %870 = vmatpush1.msra.mxu0 %v757
  %871 = vmatprep.subr.mxu0 0.0
  %872 = vmatpush1.msra.mxu0 %v754
  %873 = vmatprep.subr.mxu0 0.0
  %874 = vmatpush1.msra.mxu0 %v751
  %875 = vmatprep.subr.mxu0 0.0
  %876 = vmatpush1.msra.mxu0 %v748
  %877 = vmatprep.subr.mxu0 0.0
  %878 = vmatpush1.msra.mxu0 %v745
  %879 = vmatprep.subr.mxu0 0.0
  %880 = vmatpush2.msra.mxu0 0.0
  %881 = vmatprep.subr.mxu0 0.0
  %882 = vmatpush2.msra.mxu0 0.0
  %883 = vmatprep.subr.mxu0 0.0
  %884 = vmatpush2.msra.mxu0 0.0
  %885 = vmatprep.subr.mxu0 0.0
  %886 = vmatpush2.msra.mxu0 0.0
  %887 = vmatprep.subr.mxu0 0.0
  %888 = vmatpush2.msra.mxu0 0.0
  %889 = vmatprep.subr.mxu0 0.0
  %890 = vmatpush2.msra.mxu0 0.0
  %891 = vmatprep.subr.mxu0 0.0
  %892 = vmatpush2.msra.mxu0 0.0
  %893 = vmatprep.subr.mxu0 0.0
  %894 = vmatpush2.msra.mxu0 0.0
  %895 = vmatprep.subr.mxu0 0.0
  %896 = vmatpush2.msra.mxu0 0.0
  %897 = vmatprep.subr.mxu0 0.0
  %898 = vmatpush2.msra.mxu0 0.0
  %899 = vmatprep.subr.mxu0 0.0
  %900 = vmatpush2.msra.mxu0 0.0
  %901 = vmatprep.subr.mxu0 0.0
  %902 = vmatpush2.msra.mxu0 0.0
  %903 = vmatprep.subr.mxu0 0.0
  %904 = vmatpush2.msra.mxu0 0.0
  %905 = vmatprep.subr.mxu0 0.0
  %906 = vmatpush2.msra.mxu0 0.0
  %907 = vmatprep.subr.mxu0 0.0
  %908 = vmatpush2.msra.mxu0 0.0
  %909 = vmatprep.subr.mxu0 0.0
  %910 = vmatpush2.msra.mxu0 0.0
  %911 = vmatprep.mubr.f32.mxu0 0.0
  %912 = vmatmul.mubr.f32.gmra.mxu0 %v261
  %v913 = vpop.f32.mrf.mxu0
  %v914 = vadd.f32 0.0, %v913
  %v915 = vpop.f32.mrf.mxu0
  %916 = vmatprep.mubr.f32.mxu0 0.0
  %917 = vmatmul.mubr.f32.gmra.mxu0 %v264
  %v918 = vpop.f32.mrf.mxu0
  %v919 = vadd.f32 0.0, %v918
  %v920 = vpop.f32.mrf.mxu0
  %921 = vdwg.mxu0
  %v923 = vsel %vm62, %v914, 0
  %v926 = vsel %vm62, %v919, 0
  %928 = vmatprep.subr.mxu0 0.0
  %929 = vmatpush1.msra.mxu0 %v34
  %930 = vmatprep.subr.mxu0 0.0
  %931 = vmatpush1.msra.mxu0 %v33
  %932 = vmatprep.subr.mxu0 0.0
  %933 = vmatpush1.msra.mxu0 %v32
  %934 = vmatprep.subr.mxu0 0.0
  %935 = vmatpush1.msra.mxu0 %v31
  %936 = vmatprep.subr.mxu0 0.0
  %937 = vmatpush1.msra.mxu0 %v30
  %938 = vmatprep.subr.mxu0 0.0
  %939 = vmatpush1.msra.mxu0 %v29
  %940 = vmatprep.subr.mxu0 0.0
  %941 = vmatpush1.msra.mxu0 %v28
  %942 = vmatprep.subr.mxu0 0.0
  %943 = vmatpush1.msra.mxu0 %v27
  %944 = vmatprep.subr.mxu0 0.0
  %945 = vmatpush1.msra.mxu0 %v26
  %946 = vmatprep.subr.mxu0 0.0
  %947 = vmatpush1.msra.mxu0 %v25
  %948 = vmatprep.subr.mxu0 0.0
  %949 = vmatpush1.msra.mxu0 %v24
  %950 = vmatprep.subr.mxu0 0.0
  %951 = vmatpush1.msra.mxu0 %v23
  %952 = vmatprep.subr.mxu0 0.0
  %953 = vmatpush1.msra.mxu0 %v22
  %954 = vmatprep.subr.mxu0 0.0
  %955 = vmatpush1.msra.mxu0 %v21
  %956 = vmatprep.subr.mxu0 0.0
  %957 = vmatpush1.msra.mxu0 %v20
  %958 = vmatprep.subr.mxu0 0.0
  %959 = vmatpush1.msra.mxu0 %v19
  %960 = vmatprep.subr.mxu0 0.0
  %961 = vmatpush2.msra.mxu0 %v50
  %962 = vmatprep.subr.mxu0 0.0
  %963 = vmatpush2.msra.mxu0 %v49
  %964 = vmatprep.subr.mxu0 0.0
  %965 = vmatpush2.msra.mxu0 %v48
  %966 = vmatprep.subr.mxu0 0.0
  %967 = vmatpush2.msra.mxu0 %v47
  %968 = vmatprep.subr.mxu0 0.0
  %969 = vmatpush2.msra.mxu0 %v46
  %970 = vmatprep.subr.mxu0 0.0
  %971 = vmatpush2.msra.mxu0 %v45
  %972 = vmatprep.subr.mxu0 0.0
  %973 = vmatpush2.msra.mxu0 %v44
  %974 = vmatprep.subr.mxu0 0.0
  %975 = vmatpush2.msra.mxu0 %v43
  %976 = vmatprep.subr.mxu0 0.0
  %977 = vmatpush2.msra.mxu0 %v42
  %978 = vmatprep.subr.mxu0 0.0
  %979 = vmatpush2.msra.mxu0 %v41
  %980 = vmatprep.subr.mxu0 0.0
  %981 = vmatpush2.msra.mxu0 %v40
  %982 = vmatprep.subr.mxu0 0.0
  %983 = vmatpush2.msra.mxu0 %v39
  %984 = vmatprep.subr.mxu0 0.0
  %985 = vmatpush2.msra.mxu0 %v38
  %986 = vmatprep.subr.mxu0 0.0
  %987 = vmatpush2.msra.mxu0 %v37
  %988 = vmatprep.subr.mxu0 0.0
  %989 = vmatpush2.msra.mxu0 %v36
  %990 = vmatprep.subr.mxu0 0.0
  %991 = vmatpush2.msra.mxu0 %v35
  %992 = vmatprep.mubr.f32.mxu0 %v839
  %993 = vmatmul.mubr.f32.gmra.mxu0 %v837
  %v994 = vpop.f32.mrf.mxu0
  %v995 = vadd.f32 %v55, %v994
  %v996 = vpop.f32.mrf.mxu0
  %997 = vmatprep.mubr.f32.mxu0 %v845
  %998 = vmatmul.mubr.f32.gmra.mxu0 %v843
  %v999 = vpop.f32.mrf.mxu0
  %v1000 = vadd.f32 %v56, %v999
  %v1001 = vpop.f32.mrf.mxu0
  %1002 = vdwg.mxu0
  %1003 = vmatprep.subr.mxu0 0.0
  %1004 = vmatpush1.msra.mxu0 0.0
  %1005 = vmatprep.subr.mxu0 0.0
  %1006 = vmatpush1.msra.mxu0 0.0
  %1007 = vmatprep.subr.mxu0 0.0
  %1008 = vmatpush1.msra.mxu0 0.0
  %1009 = vmatprep.subr.mxu0 0.0
  %1010 = vmatpush1.msra.mxu0 0.0
  %1011 = vmatprep.subr.mxu0 0.0
  %1012 = vmatpush1.msra.mxu0 0.0
  %1013 = vmatprep.subr.mxu0 0.0
  %1014 = vmatpush1.msra.mxu0 0.0
  %1015 = vmatprep.subr.mxu0 0.0
  %1016 = vmatpush1.msra.mxu0 0.0
  %1017 = vmatprep.subr.mxu0 0.0
  %1018 = vmatpush1.msra.mxu0 0.0
  %1019 = vmatprep.subr.mxu0 0.0
  %1020 = vmatpush1.msra.mxu0 0.0
  %1021 = vmatprep.subr.mxu0 0.0
  %1022 = vmatpush1.msra.mxu0 0.0
  %1023 = vmatprep.subr.mxu0 0.0
  %1024 = vmatpush1.msra.mxu0 0.0
  %1025 = vmatprep.subr.mxu0 0.0
  %1026 = vmatpush1.msra.mxu0 0.0
  %1027 = vmatprep.subr.mxu0 0.0
  %1028 = vmatpush1.msra.mxu0 %v54
  %1029 = vmatprep.subr.mxu0 0.0
  %1030 = vmatpush1.msra.mxu0 %v53
  %1031 = vmatprep.subr.mxu0 0.0
  %1032 = vmatpush1.msra.mxu0 %v52
  %1033 = vmatprep.subr.mxu0 0.0
  %1034 = vmatpush1.msra.mxu0 %v51
  %1035 = vmatprep.subr.mxu0 0.0
  %1036 = vmatpush2.msra.mxu0 0.0
  %1037 = vmatprep.subr.mxu0 0.0
  %1038 = vmatpush2.msra.mxu0 0.0
  %1039 = vmatprep.subr.mxu0 0.0
  %1040 = vmatpush2.msra.mxu0 0.0
  %1041 = vmatprep.subr.mxu0 0.0
  %1042 = vmatpush2.msra.mxu0 0.0
  %1043 = vmatprep.subr.mxu0 0.0
  %1044 = vmatpush2.msra.mxu0 0.0
  %1045 = vmatprep.subr.mxu0 0.0
  %1046 = vmatpush2.msra.mxu0 0.0
  %1047 = vmatprep.subr.mxu0 0.0
  %1048 = vmatpush2.msra.mxu0 0.0
  %1049 = vmatprep.subr.mxu0 0.0
  %1050 = vmatpush2.msra.mxu0 0.0
  %1051 = vmatprep.subr.mxu0 0.0
  %1052 = vmatpush2.msra.mxu0 0.0
  %1053 = vmatprep.subr.mxu0 0.0
  %1054 = vmatpush2.msra.mxu0 0.0
  %1055 = vmatprep.subr.mxu0 0.0
  %1056 = vmatpush2.msra.mxu0 0.0
  %1057 = vmatprep.subr.mxu0 0.0
  %1058 = vmatpush2.msra.mxu0 0.0
  %1059 = vmatprep.subr.mxu0 0.0
  %1060 = vmatpush2.msra.mxu0 0.0
  %1061 = vmatprep.subr.mxu0 0.0
  %1062 = vmatpush2.msra.mxu0 0.0
  %1063 = vmatprep.subr.mxu0 0.0
  %1064 = vmatpush2.msra.mxu0 0.0
  %1065 = vmatprep.subr.mxu0 0.0
  %1066 = vmatpush2.msra.mxu0 0.0
  %1067 = vmatprep.mubr.f32.mxu0 0.0
  %1068 = vmatmul.mubr.f32.gmra.mxu0 %v923
  %v1069 = vpop.f32.mrf.mxu0
  %v1070 = vadd.f32 %v995, %v1069
  %v1071 = vpop.f32.mrf.mxu0
  %1072 = vmatprep.mubr.f32.mxu0 0.0
  %1073 = vmatmul.mubr.f32.gmra.mxu0 %v926
  %v1074 = vpop.f32.mrf.mxu0
  %v1075 = vadd.f32 %v1000, %v1074
  %v1076 = vpop.f32.mrf.mxu0
  %1077 = vdwg.mxu0
  %s1078 = scalar_lea.vmem %s4, 16
  %1079 = vst [vmem:[%s1078] sm:$0xff] %v1070
  %1080 = vst [vmem:[%s1078 + $0x8] sm:$0xff] %v1075
  // Predicated region
  $region18: #{saxspy_forward.1} parent=0 // pred_check
    _
  $region19: #{saxspy_forward.1} parent=0 // pred_check_branch
    %1082 = sbr.rel (0) target = $region21
  $region20: #{saxspy_forward.1} parent=0 // pred_region
    _
  $region21: #{saxspy_forward.1} parent=0 // pred_fallthru
    _
  // Predicated region
  $region22: #{saxspy_forward.1} parent=0 // pred_check
    _
  $region23: #{saxspy_forward.1} parent=0 // pred_check_branch
    %1084 = sbr.rel (0) target = $region25
  $region24: #{saxspy_forward.1} parent=0 // pred_region
    _
  $region25: #{saxspy_forward.1} parent=0 // pred_fallthru
    _

</llo_original>
